<compile_context>
chip_gen: v5e
topology: v5e:2x2
jax: 0.10.0
libtpu: 0.0.40
codegen_flags: <defaults>
</compile_context>

<pallas_src>
import functools

import jax
import jax.numpy as jnp
from jax.experimental import pallas as pl
from jax.experimental.pallas import tpu as pltpu


def _layernorm_kernel(x_ref, g_ref, b_ref, o_ref, *, eps):
    # x_ref: (row_tile, F); g_ref / b_ref: (1, F). Normalize over the last axis.
    x = x_ref[...].astype(jnp.float32)
    inv_n = 1.0 / x.shape[-1]
    # Fused single sweep: sum(x) and sum(x*x); var = E[x^2] - mean^2 in f32,
    # clamped at 0 for numerical safety (matches F.layer_norm's biased var).
    s = jnp.sum(x, axis=-1, keepdims=True)
    ss = jnp.sum(x * x, axis=-1, keepdims=True)
    mean = s * inv_n
    var = jnp.maximum(ss * inv_n - mean * mean, 0.0)
    inv = jax.lax.rsqrt(var + eps)
    g = g_ref[...].astype(jnp.float32)
    b = b_ref[...].astype(jnp.float32)
    o_ref[...] = ((x - mean) * inv * g + b).astype(o_ref.dtype)


def _sublane_multiple(dtype) -> int:
    # Native sublane packing: f32 -> 8, bf16 -> 16, int8/fp8 -> 32.
    itemsize = jnp.dtype(dtype).itemsize
    return max(8, 32 // max(1, itemsize))


def _vmem_capacity_bytes() -> int:
    try:
        return int(pltpu.get_tpu_info().vmem_capacity_bytes)
    except Exception:
        return 64 << 20  # conservative fallback (v7x per-TC VMEM)


def _layer_norm_xla(x, gamma, beta, eps):
    # Fallback for lane-sparse feature dims (F < 128), where masked stores and
    # an under-filled lane reduce make a Pallas kernel worse than XLA's fusion.
    x32 = x.astype(jnp.float32)
    mean = jnp.mean(x32, axis=-1, keepdims=True)
    var = jnp.mean(jnp.square(x32 - mean), axis=-1, keepdims=True)
    y = (x32 - mean) * jax.lax.rsqrt(var + eps)
    y = y * gamma.astype(jnp.float32) + beta.astype(jnp.float32)
    return y.astype(x.dtype)


def layer_norm_pallas(x, gamma=None, beta=None, eps=1e-6, row_tile=None):
    """LayerNorm over the last axis == F.layer_norm(x, (F,), gamma, beta, eps).

    Note: default eps=1e-6 matches this module's LayerNorm(features, eps=1e-06)
    (torch.nn.LayerNorm's own default would be 1e-5).
    """
    orig_shape = x.shape
    features = orig_shape[-1]
    dtype = x.dtype
    if gamma is None:
        gamma = jnp.ones((features,), dtype=dtype)
    if beta is None:
        beta = jnp.zeros((features,), dtype=dtype)

    if features < 128:
        # Lane-sparse path: leave to XLA fusion.
        return _layer_norm_xla(x, gamma, beta, eps)

    x2 = x.reshape(-1, features)
    rows = x2.shape[0]
    itemsize = jnp.dtype(dtype).itemsize
    sub = _sublane_multiple(dtype)
    cap = _vmem_capacity_bytes()

    if row_tile is None:
        # VMEM footprint per grid step: double-buffered input + output blocks
        # plus the in-kernel f32 working copy of the tile.
        #   bytes/row ~= 2*F*in_itemsize + 2*F*out_itemsize + 2*F*4
        budget = max(8 << 20, (cap * 3) // 8)
        bytes_per_row = features * (2 * itemsize + 2 * itemsize + 2 * 4)
        row_tile = max(sub, budget // max(1, bytes_per_row))
        # Keep >= ~4 grid steps (2 per TensorCore on v7x) for pipelining /
        # megacore sharding, but only if each block stays >= ~2 MiB.
        min_steps = 4
        min_block_bytes = 2 << 20
        min_rows_per_block = max(sub, min_block_bytes // (features * itemsize))
        if rows > min_steps * min_rows_per_block:
            row_tile = min(row_tile, pl.cdiv(rows, min_steps))

    # Align to sublane packing; ragged row counts are handled by the Pallas
    # edge-block clamp (no padding pass over HBM, no output slice copy).
    if rows >= sub:
        row_tile = max(sub, (min(int(row_tile), rows) // sub) * sub)
    else:
        row_tile = rows  # block equals the full array dim (allowed)
    grid_steps = pl.cdiv(rows, row_tile)

    g2 = gamma.reshape(1, features)
    b2 = beta.reshape(1, features)

    block_in = row_tile * features * itemsize
    block_out = block_in
    work_f32 = row_tile * features * 4

    # 3-deep input pipeline when a small-VMEM chip (v7x, 64 MiB) forces smaller
    # blocks, so the shorter per-step DMAs stay hidden behind compute.
    in_buffers = 3 if (cap <= (64 << 20) and grid_steps >= 3
                       and block_in <= (4 << 20)) else 2
    x_spec_kwargs = {}
    if in_buffers == 3:
        x_spec_kwargs["pipeline_mode"] = pl.Buffered(3)

    # Raise the scoped VMEM limit so the blocks + in-kernel f32 working set are
    # not rejected by the default (16/32 MiB).
    needed = (in_buffers * block_in + 2 * block_out + 2 * work_f32
              + 4 * features * 4)
    vmem_limit = int(min(cap, max(32 << 20, needed + (8 << 20))))

    param_bytes = 2 * features * jnp.dtype(gamma.dtype).itemsize
    cost = pl.CostEstimate(
        flops=8 * rows * features,
        transcendentals=rows,
        bytes_accessed=2 * rows * features * itemsize + param_bytes,
    )

    out = pl.pallas_call(
        functools.partial(_layernorm_kernel, eps=eps),
        out_shape=jax.ShapeDtypeStruct((rows, features), dtype),
        grid_spec=pl.GridSpec(
            grid=(grid_steps,),
            in_specs=[
                pl.BlockSpec((row_tile, features), lambda i: (i, 0),
                             **x_spec_kwargs),
                pl.BlockSpec((1, features), lambda i: (0, 0)),
                pl.BlockSpec((1, features), lambda i: (0, 0)),
            ],
            out_specs=pl.BlockSpec((row_tile, features), lambda i: (i, 0)),
        ),
        compiler_params=pltpu.CompilerParams(
            dimension_semantics=("parallel",),
            vmem_limit_bytes=vmem_limit,
        ),
        cost_estimate=cost,
    )(x2, g2, b2)

    return out.reshape(orig_shape)


if __name__ == "__main__":
    eps = 1e-6

    def ref_layernorm(x, g, b, eps):
        xm = x.astype(jnp.float32)
        mean = jnp.mean(xm, axis=-1, keepdims=True)
        var = jnp.mean((xm - mean) ** 2, axis=-1, keepdims=True)
        y = (xm - mean) * jax.lax.rsqrt(var + eps) * g + b
        return y.astype(x.dtype)

    # Test 1: annotated-transformer shape (d_model=512, lane-dense),
    # module-default params (a_2 = ones, b_2 = zeros).
    key = jax.random.PRNGKey(0)
    batch, seq, d_model = 2, 8, 512
    x = jax.random.normal(key, (batch, seq, d_model), dtype=jnp.float32)
    a_2 = jnp.ones((d_model,), dtype=jnp.float32)
    b_2 = jnp.zeros((d_model,), dtype=jnp.float32)
    y = jax.block_until_ready(layer_norm_pallas(x, a_2, b_2, eps=eps))
    assert jnp.allclose(y, ref_layernorm(x, a_2, b_2, eps), atol=2e-5, rtol=2e-5), \
        "mismatch vs reference (test 1)"

    # Test 2: ragged row count (15 rows, row_tile=8 -> partial edge block, no
    # pad/slice round trip) + non-trivial scale/shift.
    k1, k2, k3 = jax.random.split(jax.random.PRNGKey(1), 3)
    x2 = jax.random.normal(k1, (3, 5, 256), dtype=jnp.float32)
    g2 = jax.random.normal(k2, (256,), dtype=jnp.float32)
    bb2 = jax.random.normal(k3, (256,), dtype=jnp.float32)
    y2 = jax.block_until_ready(layer_norm_pallas(x2, g2, bb2, eps=eps))
    assert jnp.allclose(y2, ref_layernorm(x2, g2, bb2, eps), atol=1e-4, rtol=1e-4), \
        "mismatch vs reference (test 2)"

    # Test 3: lane-sparse F (< 128) takes the XLA-fusion fallback path.
    x3 = jax.random.normal(jax.random.PRNGKey(2), (2, 8, 32), dtype=jnp.float32)
    g3 = jnp.ones((32,), dtype=jnp.float32)
    b3 = jnp.zeros((32,), dtype=jnp.float32)
    y3 = jax.block_until_ready(layer_norm_pallas(x3, g3, b3, eps=eps))
    assert jnp.allclose(y3, ref_layernorm(x3, g3, b3, eps), atol=1e-5, rtol=1e-5), \
        "mismatch vs reference (test 3)"

    print("KERNEL_OK")
</pallas_src>

<mosaic_0001>
module attributes {stable_mosaic.version = 11 : i64} {
  func.func @_layernorm_kernel(%arg0: i32, %arg1: memref<16x512xf32, #tpu.memory_space<vmem>>, %arg2: memref<1x512xf32, #tpu.memory_space<vmem>>, %arg3: memref<1x512xf32, #tpu.memory_space<vmem>>, %arg4: memref<16x512xf32, #tpu.memory_space<vmem>>) attributes {dimension_semantics = [#tpu.dimension_semantics<parallel>], iteration_bounds = array<i64: 1>, scalar_prefetch = 0 : i64, scratch_operands = 0 : i64, tpu.core_type = #tpu.core_type<tc>, window_params = [{transform_indices = @transform_0, window_bounds = array<i64: 16, 512>}, {pipeline_mode = #tpu.pipeline_mode<synchronous>, transform_indices = @transform_1, window_bounds = array<i64: 1, 512>}, {pipeline_mode = #tpu.pipeline_mode<synchronous>, transform_indices = @transform_2, window_bounds = array<i64: 1, 512>}, {transform_indices = @transform_3, window_bounds = array<i64: 16, 512>}]} {
    %c0 = arith.constant 0 : index
    %c0_0 = arith.constant 0 : index
    %0 = vector.load %arg1[%c0, %c0_0] : memref<16x512xf32, #tpu.memory_space<vmem>>, vector<16x512xf32>
    %cst = arith.constant dense<0.000000e+00> : vector<16xf32>
    %1 = vector.multi_reduction <add>, %0, %cst [1] : vector<16x512xf32> to vector<16xf32>
    %2 = vector.shape_cast %1 : vector<16xf32> to vector<16x1xf32>
    %3 = arith.mulf %0, %0 : vector<16x512xf32>
    %cst_1 = arith.constant dense<0.000000e+00> : vector<16xf32>
    %4 = vector.multi_reduction <add>, %3, %cst_1 [1] : vector<16x512xf32> to vector<16xf32>
    %5 = vector.shape_cast %4 : vector<16xf32> to vector<16x1xf32>
    %cst_2 = arith.constant 0.001953125 : f32
    %6 = vector.broadcast %cst_2 : f32 to vector<16x1xf32>
    %7 = arith.mulf %2, %6 : vector<16x1xf32>
    %cst_3 = arith.constant 0.001953125 : f32
    %8 = vector.broadcast %cst_3 : f32 to vector<16x1xf32>
    %9 = arith.mulf %5, %8 : vector<16x1xf32>
    %10 = arith.mulf %7, %7 : vector<16x1xf32>
    %11 = arith.subf %9, %10 : vector<16x1xf32>
    %cst_4 = arith.constant 0.000000e+00 : f32
    %12 = vector.broadcast %cst_4 : f32 to vector<16x1xf32>
    %13 = arith.maximumf %11, %12 : vector<16x1xf32>
    %cst_5 = arith.constant 9.99999997E-7 : f32
    %14 = vector.broadcast %cst_5 : f32 to vector<16x1xf32>
    %15 = arith.addf %13, %14 : vector<16x1xf32>
    %16 = math.rsqrt %15 : vector<16x1xf32>
    %c0_6 = arith.constant 0 : index
    %c0_7 = arith.constant 0 : index
    %17 = vector.load %arg2[%c0_6, %c0_7] : memref<1x512xf32, #tpu.memory_space<vmem>>, vector<1x512xf32>
    %c0_8 = arith.constant 0 : index
    %c0_9 = arith.constant 0 : index
    %18 = vector.load %arg3[%c0_8, %c0_9] : memref<1x512xf32, #tpu.memory_space<vmem>>, vector<1x512xf32>
    %19 = vector.broadcast %7 : vector<16x1xf32> to vector<16x512xf32>
    %20 = arith.subf %0, %19 : vector<16x512xf32>
    %21 = vector.broadcast %16 : vector<16x1xf32> to vector<16x512xf32>
    %22 = arith.mulf %20, %21 : vector<16x512xf32>
    %23 = vector.broadcast %17 : vector<1x512xf32> to vector<16x512xf32>
    %24 = arith.mulf %22, %23 : vector<16x512xf32>
    %25 = vector.broadcast %18 : vector<1x512xf32> to vector<16x512xf32>
    %26 = arith.addf %24, %25 : vector<16x512xf32>
    %c0_10 = arith.constant 0 : index
    %c0_11 = arith.constant 0 : index
    %27 = vector.load %arg4[%c0_10, %c0_11] : memref<16x512xf32, #tpu.memory_space<vmem>>, vector<16x512xf32>
    tpu.vector_store %arg4[%c0_10, %c0_11], %26 {strides = array<i32>} : memref<16x512xf32, #tpu.memory_space<vmem>>, vector<16x512xf32>,
    return
  }
  func.func @transform_0(%arg0: i32) -> (i32, i32) {
    %c0_i32 = arith.constant 0 : i32
    %c0_i32_0 = arith.constant 0 : i32
    return %arg0, %c0_i32 : i32, i32
  }
  func.func @transform_1(%arg0: i32) -> (i32, i32) {
    %c0_i32 = arith.constant 0 : i32
    %c0_i32_0 = arith.constant 0 : i32
    %c0_i32_1 = arith.constant 0 : i32
    return %c0_i32, %c0_i32_0 : i32, i32
  }
  func.func @transform_2(%arg0: i32) -> (i32, i32) {
    %c0_i32 = arith.constant 0 : i32
    %c0_i32_0 = arith.constant 0 : i32
    %c0_i32_1 = arith.constant 0 : i32
    return %c0_i32, %c0_i32_0 : i32, i32
  }
  func.func @transform_3(%arg0: i32) -> (i32, i32) {
    %c0_i32 = arith.constant 0 : i32
    %c0_i32_0 = arith.constant 0 : i32
    return %arg0, %c0_i32 : i32, i32
  }
}

</mosaic_0001>

<llo_original>
// kernel: tpu_custom_call.1
$region0: #{tpu_custom_call.1}
  #allocation0 [shape = 'u32[]', space=smem, size = 0x4, offset = 0x4, fixed_abs, tag = 'smem constant byte address 0x4 - core index']
  #allocation1 [shape = 'u32[72,128]{1,0:T(1,128)}', space=vmem, size = 0x9000, scoped, tag = 'internal scratch']
  %s0 = inlined_call_operand.hbm [shape: f32[16,512], index: 0, kind: input, shape index: {}]
  %s1 = inlined_call_operand.hbm [shape: f32[1,512], index: 1, kind: input, shape index: {}]
  %s2 = inlined_call_operand.hbm [shape: f32[1,512], index: 2, kind: input, shape index: {}]
  %s3 = inlined_call_operand.hbm [shape: f32[16,512], index: 3, kind: output, shape index: {}]
  %s4 = sld [smem:[#allocation0]]
  $region34: #{tpu_custom_call.1} parent=0
    _
  %s6 = ssub.s32 1, %s4
  %s7 = scalar_select 0, %s6, %s4
  $region1: #{tpu_custom_call.1} parent=0
    #allocation2 [shape = 'u8[32768]{0}', space=vmem, size = 0x8000, scoped, tag = 'input window, operand 0, single buffered']
    #allocation3 [shape = 's32[1]{0}', space=sflag, size = 0x4, scoped, tag = 'scoped memory for tpu_custom_call.1']
    #allocation4 [shape = 's32[1]{0}', space=sflag, size = 0x4, scoped, tag = 'scoped memory for tpu_custom_call.1']
    #allocation5 [shape = 'u8[2048]{0}', space=vmem, size = 0x800, scoped, tag = 'input window, operand 1, single buffered']
    #allocation6 [shape = 's32[1]{0}', space=sflag, size = 0x4, scoped, tag = 'scoped memory for tpu_custom_call.1']
    #allocation7 [shape = 'u8[2048]{0}', space=vmem, size = 0x800, scoped, tag = 'input window, operand 2, single buffered']
    #allocation8 [shape = 'u8[32768]{0}', space=vmem, size = 0x8000, scoped, tag = 'output window, operand 0, single buffered']
    %8 = vsyncpa [#allocation3], 0
    %9 = vsyncpa [#allocation6], 0
    %10 = vsyncpa [#allocation4], 0
    // Predicated region
    $region2: #{tpu_custom_call.1} parent=1 // pred_check
      _
    $region3: #{tpu_custom_call.1} parent=1 // pred_check_branch
      %12 = sbr.rel (0) target = $region5
    $region4: #{tpu_custom_call.1} parent=1 // pred_region
      %14 = vsyncadd [#allocation3], 0
      %s15 = sshll.u32 %s0, 4
      %s16 = int_to_ptr.hbm [resolvable:$true] %s15
      %s17 = sshll.u32 [#allocation2], 4
      %s18 = int_to_ptr.vmem [resolvable:$true] %s17
      %23 = dma.hbm_to_vmem [thread:$0]  %s16, 1024, %s18, [#allocation3], 512, 512, 32
    $region5: #{tpu_custom_call.1} parent=1 // pred_fallthru
      _
    // Predicated region
    $region6: #{tpu_custom_call.1} parent=1 // pred_check
      _
    $region7: #{tpu_custom_call.1} parent=1 // pred_check_branch
      %25 = sbr.rel (0) target = $region9
    $region8: #{tpu_custom_call.1} parent=1 // pred_region
      %27 = vsyncadd [#allocation6], 0
      %s29 = sshll.u32 %s1, 4
      %s30 = int_to_ptr.hbm [resolvable:$true] %s29
      %s31 = sshll.u32 [#allocation5], 4
      %s32 = int_to_ptr.vmem [resolvable:$true] %s31
      %34 = dma.hbm_to_vmem [thread:$0]  %s30, 64, %s32, [#allocation6]
    $region9: #{tpu_custom_call.1} parent=1 // pred_fallthru
      _
    // Predicated region
    $region10: #{tpu_custom_call.1} parent=1 // pred_check
      _
    $region11: #{tpu_custom_call.1} parent=1 // pred_check_branch
      %36 = sbr.rel (0) target = $region13
    $region12: #{tpu_custom_call.1} parent=1 // pred_region
      %38 = vsyncadd [#allocation6], 0
      %s40 = sshll.u32 %s2, 4
      %s41 = int_to_ptr.hbm [resolvable:$true] %s40
      %s42 = sshll.u32 [#allocation7], 4
      %s43 = int_to_ptr.vmem [resolvable:$true] %s42
      %45 = dma.hbm_to_vmem [thread:$0]  %s41, 64, %s43, [#allocation6]
    $region13: #{tpu_custom_call.1} parent=1 // pred_fallthru
      _
    // Predicated region
    $region14: #{tpu_custom_call.1} parent=1 // pred_check
      _
    $region15: #{tpu_custom_call.1} parent=1 // pred_check_branch
      %47 = sbr.rel (0) target = $region17
    $region16: #{tpu_custom_call.1} parent=1 // pred_region
      %49 = dma.done [#allocation3], 1024
    $region17: #{tpu_custom_call.1} parent=1 // pred_fallthru
      _
    // Predicated region
    $region18: #{tpu_custom_call.1} parent=1 // pred_check
      _
    $region19: #{tpu_custom_call.1} parent=1 // pred_check_branch
      %51 = sbr.rel (0) target = $region21
    $region20: #{tpu_custom_call.1} parent=1 // pred_region
      %53 = dma.done [#allocation6], 64
    $region21: #{tpu_custom_call.1} parent=1 // pred_fallthru
      _
    // Predicated region
    $region22: #{tpu_custom_call.1} parent=1 // pred_check
      _
    $region23: #{tpu_custom_call.1} parent=1 // pred_check_branch
      %55 = sbr.rel (0) target = $region25
    $region24: #{tpu_custom_call.1} parent=1 // pred_region
      %57 = dma.done [#allocation6], 64
    $region25: #{tpu_custom_call.1} parent=1 // pred_fallthru
      _
    %v58 = vld [vmem:[#allocation2] sm:$0xff]
    %v59 = vld [vmem:[#allocation2 + $0x8] sm:$0xff]
    %v60 = vld [vmem:[#allocation2 + $0x10] sm:$0xff]
    %v61 = vld [vmem:[#allocation2 + $0x18] sm:$0xff]
    %v62 = vld [vmem:[#allocation2 + $0x20] sm:$0xff]
    %v63 = vld [vmem:[#allocation2 + $0x28] sm:$0xff]
    %v64 = vld [vmem:[#allocation2 + $0x30] sm:$0xff]
    %v65 = vld [vmem:[#allocation2 + $0x38] sm:$0xff]
    %v66 = vadd.f32 %v58, %v59
    %v67 = vadd.f32 %v66, %v60
    %v68 = vadd.f32 %v67, %v61
    %69 = vadd.xlane.f32.xlu0 %v68
    %v70 = vpop.xlane.xlu0 %69
    %v71 = vadd.f32 %v62, %v63
    %v72 = vadd.f32 %v71, %v64
    %v73 = vadd.f32 %v72, %v65
    %74 = vadd.xlane.f32.xlu0 %v73
    %v75 = vpop.xlane.xlu0 %74
    %v76 = vmul.f32 %v58, %v58
    %v77 = vmul.f32 %v59, %v59
    %v78 = vmul.f32 %v60, %v60
    %v79 = vmul.f32 %v61, %v61
    %v80 = vmul.f32 %v62, %v62
    %v81 = vmul.f32 %v63, %v63
    %v82 = vmul.f32 %v64, %v64
    %v83 = vmul.f32 %v65, %v65
    %v84 = vadd.f32 %v76, %v77
    %v85 = vadd.f32 %v84, %v78
    %v86 = vadd.f32 %v85, %v79
    %87 = vadd.xlane.f32.xlu0 %v86
    %v88 = vpop.xlane.xlu0 %87
    %v89 = vadd.f32 %v80, %v81
    %v90 = vadd.f32 %v89, %v82
    %v91 = vadd.f32 %v90, %v83
    %92 = vadd.xlane.f32.xlu0 %v91
    %v93 = vpop.xlane.xlu0 %92
    %v94 = vmul.f32 %v70, 0.001953125
    %v95 = vmul.f32 %v75, 0.001953125
    %v96 = vmul.f32 %v88, 0.001953125
    %v97 = vmul.f32 %v93, 0.001953125
    %v98 = vmul.f32 %v94, %v94
    %v99 = vmul.f32 %v95, %v95
    %v100 = vsub.f32 %v96, %v98
    %v101 = vsub.f32 %v97, %v99
    %v102 = vmax.f32 %v100, 0.0
    %v103 = vmax.f32 %v101, 0.0
    %v104 = vadd.f32 %v102, 1e-06
    %v105 = vadd.f32 %v103, 1e-06
    %v106 = vrsqrt.pop %v104
    %v107 = vmul.f32 %v106, %v104
    %v108 = vmul.f32 %v107, %v106
    %v109 = vmul.f32 0.5, %v108
    %v110 = vsub.f32 1.5, %v109
    %v111 = vmul.f32 %v106, %v110
    %vm112 = vweird.f32 %v104
    %vm113 = vweird.f32 %v106
    %vm114 = vmor %vm112, %vm113
    %v115 = vsel %vm114, %v106, %v111
    %v116 = vrsqrt.pop %v105
    %v117 = vmul.f32 %v116, %v105
    %v118 = vmul.f32 %v117, %v116
    %v119 = vmul.f32 0.5, %v118
    %v120 = vsub.f32 1.5, %v119
    %v121 = vmul.f32 %v116, %v120
    %vm122 = vweird.f32 %v105
    %vm123 = vweird.f32 %v116
    %vm124 = vmor %vm122, %vm123
    %v125 = vsel %vm124, %v116, %v121
    %v126 = vld [vmem:[#allocation5] sm:$0xf]
    %v127 = vld [vmem:[#allocation7] sm:$0xf]
    %v128 = vsub.f32 %v58, %v94
    %v129 = vsub.f32 %v59, %v94
    %v130 = vsub.f32 %v60, %v94
    %v131 = vsub.f32 %v61, %v94
    %v132 = vsub.f32 %v62, %v95
    %v133 = vsub.f32 %v63, %v95
    %v134 = vsub.f32 %v64, %v95
    %v135 = vsub.f32 %v65, %v95
    %v136 = vmul.f32 %v128, %v115
    %v137 = vmul.f32 %v129, %v115
    %v138 = vmul.f32 %v130, %v115
    %v139 = vmul.f32 %v131, %v115
    %v140 = vmul.f32 %v132, %v125
    %v141 = vmul.f32 %v133, %v125
    %v142 = vmul.f32 %v134, %v125
    %v143 = vmul.f32 %v135, %v125
    %v145 = vperm.slane %v126, 0
    %v146 = vperm.slane %v126, 1
    %v147 = vperm.slane %v126, 2
    %v148 = vperm.slane %v126, 3
    %v153 = vmul.f32 %v136, %v145
    %v154 = vmul.f32 %v137, %v146
    %v155 = vmul.f32 %v138, %v147
    %v156 = vmul.f32 %v139, %v148
    %v157 = vmul.f32 %v140, %v145
    %v158 = vmul.f32 %v141, %v146
    %v159 = vmul.f32 %v142, %v147
    %v160 = vmul.f32 %v143, %v148
    %v162 = vperm.slane %v127, 0
    %v163 = vperm.slane %v127, 1
    %v164 = vperm.slane %v127, 2
    %v165 = vperm.slane %v127, 3
    %v170 = vadd.f32 %v153, %v162
    %v171 = vadd.f32 %v154, %v163
    %v172 = vadd.f32 %v155, %v164
    %v173 = vadd.f32 %v156, %v165
    %v174 = vadd.f32 %v157, %v162
    %v175 = vadd.f32 %v158, %v163
    %v176 = vadd.f32 %v159, %v164
    %v177 = vadd.f32 %v160, %v165
    %178 = vst [vmem:[#allocation8] sm:$0xff] %v170
    %179 = vst [vmem:[#allocation8 + $0x8] sm:$0xff] %v171
    %180 = vst [vmem:[#allocation8 + $0x10] sm:$0xff] %v172
    %181 = vst [vmem:[#allocation8 + $0x18] sm:$0xff] %v173
    %182 = vst [vmem:[#allocation8 + $0x20] sm:$0xff] %v174
    %183 = vst [vmem:[#allocation8 + $0x28] sm:$0xff] %v175
    %184 = vst [vmem:[#allocation8 + $0x30] sm:$0xff] %v176
    %185 = vst [vmem:[#allocation8 + $0x38] sm:$0xff] %v177
    // Predicated region
    $region26: #{tpu_custom_call.1} parent=1 // pred_check
      _
    $region27: #{tpu_custom_call.1} parent=1 // pred_check_branch
      %187 = sbr.rel (0) target = $region29
    $region28: #{tpu_custom_call.1} parent=1 // pred_region
      %189 = vsyncadd [#allocation4], 0
      %s190 = sshll.u32 [#allocation8], 4
      %s191 = int_to_ptr.vmem [resolvable:$true] %s190
      %s192 = sshll.u32 %s3, 4
      %s193 = int_to_ptr.hbm [resolvable:$true] %s192
      %198 = dma.vmem_to_hbm [thread:$0]  %s191, 1024, %s193, [#allocation4], 512, 512, 32
    $region29: #{tpu_custom_call.1} parent=1 // pred_fallthru
      _
    // Predicated region
    $region30: #{tpu_custom_call.1} parent=1 // pred_check
      _
    $region31: #{tpu_custom_call.1} parent=1 // pred_check_branch
      %200 = sbr.rel (0) target = $region33
    $region32: #{tpu_custom_call.1} parent=1 // pred_region
      %202 = dma.done [#allocation4], 1024
    $region33: #{tpu_custom_call.1} parent=1 // pred_fallthru
      _
    %203 = vsyncpa [#allocation3], 1
    %204 = vsyncpa [#allocation6], 1
    %205 = vsyncpa [#allocation4], 1

</llo_original>
